<compile_context>
chip_gen: v7x
topology: tpu7x:2x2x1
jax: 0.10.0
libtpu: 0.0.40
codegen_flags: <defaults>
</compile_context>

<pallas_src>
import functools

import jax
import jax.numpy as jnp
from jax.experimental import pallas as pl
from jax.experimental.pallas import tpu as pltpu


def _fpn_kernel(x_ref, w_ref, b_ref, out_ref, acc_ref, *, inv_hw):
    # x_ref   : (TB, Cin, HW_TILE)  activation tile (may be bf16)
    # w_ref   : (Cin, NC)           folded weight  Weff = W1^T @ W2^T
    # b_ref   : (1, NC)             folded bias    beff = b1 @ W2^T + b2
    # out_ref : (TB, NC)
    # acc_ref : (TB, Cin) f32       running spatial sum (VMEM scratch)
    s = pl.program_id(1)

    @pl.when(s == 0)
    def _():
        acc_ref[...] = jnp.zeros_like(acc_ref)

    # Accumulate the spatial sum in f32 regardless of the streamed dtype.
    acc_ref[...] += jnp.sum(x_ref[...].astype(jnp.float32), axis=-1)

    @pl.when(s == pl.num_programs(1) - 1)
    def _():
        pooled = acc_ref[...] * inv_hw                            # [TB, Cin]
        out_ref[...] = (
            jnp.dot(pooled, w_ref[...], preferred_element_type=jnp.float32)
            + b_ref[...]
        ).astype(out_ref.dtype)                                   # [TB, NC]


def _choose_batch_tile(n):
    if n <= 8:
        return n
    for cand in (8, 4, 2, 1):
        if n % cand == 0:
            return cand
    return 1


def _choose_hw_tile(hw, tb, cin, itemsize, budget_bytes=4 << 20):
    """Largest spatial tile that fits a ~4 MiB block (x2 double-buffering
    stays well inside every chip's scoped VMEM default) and satisfies the
    Pallas lane constraint (tile == hw, or tile % 128 == 0 and divides hw)."""
    if tb * cin * hw * itemsize <= budget_bytes:
        return hw
    max_rows = budget_bytes // max(1, tb * cin * itemsize)
    t = max(128, (max_rows // 128) * 128)
    while t >= 128:
        if hw % t == 0:
            return t
        t -= 128
    return hw  # fallback: cannot tile evenly -> take the whole plane


def fpn_forward(inputs_nchw, params, *, stream_dtype=None):
    """Reproduces FPN.forward for the (single) live block.

    inputs_nchw: list of NCHW arrays; only the last one (first after reverse)
                 is consumed, matching the PyTorch module.
    params: dict with 'conv_w' [256, Cin], 'conv_b' [256],
            'lin_w' [NC, 256], 'lin_b' [NC].
    stream_dtype: optional dtype (e.g. jnp.bfloat16) for streaming the
                  activation from HBM; accumulation stays f32.
    Returns: list with a single [N, num_classes] prediction.
    """
    # inputs.reverse(); inputs[0] is the last scale.
    x = inputs_nchw[-1]                                   # [N, Cin, H, W]
    n, cin, h, w = x.shape
    hw = h * w
    x = x.reshape(n, cin, hw)                             # reshape only, no transpose
    if stream_dtype is not None:
        x = x.astype(stream_dtype)

    conv_w = params["conv_w"].astype(jnp.float32)         # [256, Cin]
    conv_b = params["conv_b"].astype(jnp.float32)         # [256]
    lin_w = params["lin_w"].astype(jnp.float32)           # [NC, 256]
    lin_b = params["lin_b"].astype(jnp.float32)           # [NC]

    # Fold the 1x1 conv and the linear into one affine map (exact, linearity).
    w_eff = conv_w.T @ lin_w.T                            # [Cin, NC]
    b_eff = (conv_b @ lin_w.T + lin_b)[None, :]           # [1, NC]
    nc = b_eff.shape[-1]

    tb = _choose_batch_tile(n)
    hw_tile = _choose_hw_tile(hw, tb, cin, x.dtype.itemsize)

    kernel = functools.partial(_fpn_kernel, inv_hw=1.0 / float(hw))

    out = pl.pallas_call(
        kernel,
        out_shape=jax.ShapeDtypeStruct((n, nc), jnp.float32),
        grid_spec=pltpu.PrefetchScalarGridSpec(
            num_scalar_prefetch=0,
            grid=(n // tb, hw // hw_tile),                # (batch tiles, HW tiles)
            in_specs=[
                pl.BlockSpec((tb, cin, hw_tile), lambda b, s: (b, 0, s)),
                pl.BlockSpec((cin, nc), lambda b, s: (0, 0)),
                pl.BlockSpec((1, nc), lambda b, s: (0, 0)),
            ],
            out_specs=pl.BlockSpec((tb, nc), lambda b, s: (b, 0)),
            scratch_shapes=[pltpu.VMEM((tb, cin), jnp.float32)],
        ),
        compiler_params=pltpu.CompilerParams(
            dimension_semantics=("parallel", "arbitrary")),
    )(x, w_eff, b_eff)

    # TODO(synk): the bilinear-interpolate(+)conv branch of FPN.forward is
    # unreachable (blocks list truncated to length 1 in __init__), so it is
    # intentionally not implemented.
    return [out]


def _reference(inputs_nchw, params):
    # Faithful conv-then-pool order, f32 (mirrors the PyTorch module).
    x = inputs_nchw[-1].astype(jnp.float32)
    n, cin, h, w = x.shape
    xf = jnp.transpose(x, (0, 2, 3, 1)).reshape(n, h * w, cin)
    conv = jnp.einsum("nsc,oc->nso", xf, params["conv_w"]) + params["conv_b"]
    pooled = jnp.mean(conv, axis=1)
    return [pooled @ params["lin_w"].T + params["lin_b"]]


if __name__ == "__main__":
    # Small synthetic config: in_chs = [4, 8], num_classes = 10, batch = 2.
    in_chs = [4, 8]
    num_classes = 10
    batch = 2

    key = jax.random.PRNGKey(0)
    k_in0, k_in1, k_cw, k_cb, k_lw, k_lb = jax.random.split(key, 6)

    # Two feature maps (FPN-style pyramid); only the last one is consumed.
    inputs = [
        jax.random.normal(k_in0, (batch, in_chs[0], 16, 16), jnp.float32),
        jax.random.normal(k_in1, (batch, in_chs[1], 8, 8), jnp.float32),
    ]

    params = {
        "conv_w": 0.1 * jax.random.normal(k_cw, (256, in_chs[-1]), jnp.float32),
        "conv_b": 0.1 * jax.random.normal(k_cb, (256,), jnp.float32),
        "lin_w": 0.1 * jax.random.normal(k_lw, (num_classes, 256), jnp.float32),
        "lin_b": 0.1 * jax.random.normal(k_lb, (num_classes,), jnp.float32),
    }

    ref = _reference(inputs, params)

    # f32 path: must match the PyTorch-order reference tightly.
    preds = fpn_forward(inputs, params)
    preds = [jax.block_until_ready(p) for p in preds]
    assert preds[0].shape == (batch, num_classes)
    assert jnp.allclose(preds[0], ref[0], atol=1e-4, rtol=1e-4)

    # bf16-streamed path (halved HBM traffic); looser tolerance from the cast.
    preds_bf16 = fpn_forward(inputs, params, stream_dtype=jnp.bfloat16)
    preds_bf16 = [jax.block_until_ready(p) for p in preds_bf16]
    assert jnp.allclose(preds_bf16[0], ref[0], atol=2e-2, rtol=2e-2)

    print("KERNEL_OK")
</pallas_src>

<mosaic_0001>
module attributes {stable_mosaic.version = 11 : i64} {
  func.func @_fpn_kernel(%arg0: i32, %arg1: i32, %arg2: memref<2x8x64xf32, #tpu.memory_space<vmem>>, %arg3: memref<8x10xf32, #tpu.memory_space<vmem>>, %arg4: memref<1x10xf32, #tpu.memory_space<vmem>>, %arg5: memref<2x10xf32, #tpu.memory_space<vmem>>, %arg6: memref<2x8xf32, #tpu.memory_space<vmem>>) attributes {dimension_semantics = [#tpu.dimension_semantics<parallel>, #tpu.dimension_semantics<arbitrary>], iteration_bounds = array<i64: 1, 1>, scalar_prefetch = 0 : i64, scratch_operands = 1 : i64, tpu.core_type = #tpu.core_type<tc>, window_params = [{transform_indices = @transform_0, window_bounds = array<i64: 2, 8, 64>}, {pipeline_mode = #tpu.pipeline_mode<synchronous>, transform_indices = @transform_1, window_bounds = array<i64: 8, 10>}, {pipeline_mode = #tpu.pipeline_mode<synchronous>, transform_indices = @transform_2, window_bounds = array<i64: 1, 10>}, {transform_indices = @transform_3, window_bounds = array<i64: 2, 10>}]} {
    %c0_i32 = arith.constant 0 : i32
    %0 = arith.cmpi eq, %arg1, %c0_i32 : i32
    %1 = arith.extui %0 : i1 to i32
    %c0_i32_0 = arith.constant 0 : i32
    %2 = arith.cmpi ne, %1, %c0_i32_0 : i32
    scf.if %2 {
      %cst_9 = arith.constant 0.000000e+00 : f32
      %11 = vector.broadcast %cst_9 : f32 to vector<2x8xf32>
      %c0_10 = arith.constant 0 : index
      %c0_11 = arith.constant 0 : index
      %12 = vector.load %arg6[%c0_10, %c0_11] : memref<2x8xf32, #tpu.memory_space<vmem>>, vector<2x8xf32>
      tpu.vector_store %arg6[%c0_10, %c0_11], %11 {strides = array<i32>} : memref<2x8xf32, #tpu.memory_space<vmem>>, vector<2x8xf32>,
    } else {
    }
    %c0 = arith.constant 0 : index
    %c0_1 = arith.constant 0 : index
    %3 = vector.load %arg6[%c0, %c0_1] : memref<2x8xf32, #tpu.memory_space<vmem>>, vector<2x8xf32>
    %c0_2 = arith.constant 0 : index
    %c0_3 = arith.constant 0 : index
    %c0_4 = arith.constant 0 : index
    %4 = vector.load %arg2[%c0_2, %c0_3, %c0_4] : memref<2x8x64xf32, #tpu.memory_space<vmem>>, vector<2x8x64xf32>
    %cst = arith.constant dense<0.000000e+00> : vector<2x8xf32>
    %5 = vector.multi_reduction <add>, %4, %cst [2] : vector<2x8x64xf32> to vector<2x8xf32>
    %6 = arith.addf %3, %5 : vector<2x8xf32>
    %c0_5 = arith.constant 0 : index
    %c0_6 = arith.constant 0 : index
    %7 = vector.load %arg6[%c0_5, %c0_6] : memref<2x8xf32, #tpu.memory_space<vmem>>, vector<2x8xf32>
    tpu.vector_store %arg6[%c0_5, %c0_6], %6 {strides = array<i32>} : memref<2x8xf32, #tpu.memory_space<vmem>>, vector<2x8xf32>,
    %c0_i32_7 = arith.constant 0 : i32
    %8 = arith.cmpi eq, %arg1, %c0_i32_7 : i32
    %9 = arith.extui %8 : i1 to i32
    %c0_i32_8 = arith.constant 0 : i32
    %10 = arith.cmpi ne, %9, %c0_i32_8 : i32
    scf.if %10 {
      %c0_9 = arith.constant 0 : index
      %c0_10 = arith.constant 0 : index
      %11 = vector.load %arg6[%c0_9, %c0_10] : memref<2x8xf32, #tpu.memory_space<vmem>>, vector<2x8xf32>
      %cst_11 = arith.constant 1.562500e-02 : f32
      %12 = vector.broadcast %cst_11 : f32 to vector<2x8xf32>
      %13 = arith.mulf %11, %12 : vector<2x8xf32>
      %c0_12 = arith.constant 0 : index
      %c0_13 = arith.constant 0 : index
      %14 = vector.load %arg3[%c0_12, %c0_13] : memref<8x10xf32, #tpu.memory_space<vmem>>, vector<8x10xf32>
      %cst_14 = arith.constant dense<0.000000e+00> : vector<2x10xf32>
      %15 = tpu.matmul %13, %14, %cst_14 {dimension_numbers = #tpu.dot_dimension_numbers<[1], [0], [0], [1], [0, 0, 1, 1], [], []>} : vector<2x8xf32>, vector<8x10xf32>, vector<2x10xf32> -> vector<2x10xf32>
      %c0_15 = arith.constant 0 : index
      %c0_16 = arith.constant 0 : index
      %16 = vector.load %arg4[%c0_15, %c0_16] : memref<1x10xf32, #tpu.memory_space<vmem>>, vector<1x10xf32>
      %17 = vector.broadcast %16 : vector<1x10xf32> to vector<2x10xf32>
      %18 = arith.addf %15, %17 : vector<2x10xf32>
      %c0_17 = arith.constant 0 : index
      %c0_18 = arith.constant 0 : index
      %19 = vector.load %arg5[%c0_17, %c0_18] : memref<2x10xf32, #tpu.memory_space<vmem>>, vector<2x10xf32>
      tpu.vector_store %arg5[%c0_17, %c0_18], %18 {strides = array<i32>} : memref<2x10xf32, #tpu.memory_space<vmem>>, vector<2x10xf32>,
    } else {
    }
    return
  }
  func.func @transform_0(%arg0: i32, %arg1: i32) -> (i32, i32, i32) {
    %c0_i32 = arith.constant 0 : i32
    %c0_i32_0 = arith.constant 0 : i32
    return %arg0, %c0_i32, %arg1 : i32, i32, i32
  }
  func.func @transform_1(%arg0: i32, %arg1: i32) -> (i32, i32) {
    %c0_i32 = arith.constant 0 : i32
    %c0_i32_0 = arith.constant 0 : i32
    %c0_i32_1 = arith.constant 0 : i32
    return %c0_i32, %c0_i32_0 : i32, i32
  }
  func.func @transform_2(%arg0: i32, %arg1: i32) -> (i32, i32) {
    %c0_i32 = arith.constant 0 : i32
    %c0_i32_0 = arith.constant 0 : i32
    %c0_i32_1 = arith.constant 0 : i32
    return %c0_i32, %c0_i32_0 : i32, i32
  }
  func.func @transform_3(%arg0: i32, %arg1: i32) -> (i32, i32) {
    %c0_i32 = arith.constant 0 : i32
    %c0_i32_0 = arith.constant 0 : i32
    return %arg0, %c0_i32 : i32, i32
  }
}

</mosaic_0001>

<llo_original>
// kernel: tpu_custom_call.1
$region0: #{tpu_custom_call.1}
  #allocation0 [shape = 'u32[]', space=smem, size = 0x4, offset = 0x4, fixed_abs, tag = 'smem constant byte address 0x4 - core index']
  #allocation1 [shape = 'u32[144,128]{1,0:T(1,128)}', space=vmem, size = 0x12000, scoped, tag = 'internal scratch']
  #allocation2 [shape = 'f32[2,8]{1,0:T(2,128)}', space=vmem, size = 0x400, scoped, tag = 'scratch operand']
  %s0 = inlined_call_operand.hbm [shape: f32[2,8,64], index: 0, kind: input, shape index: {}]
  %s1 = inlined_call_operand.hbm [shape: f32[8,10], index: 1, kind: input, shape index: {}]
  %s2 = inlined_call_operand.vmem [shape: f32[1,10], index: 2, kind: input, shape index: {}]
  %s3 = inlined_call_operand.hbm [shape: f32[2,10], index: 3, kind: output, shape index: {}]
  %s4 = sld [smem:[#allocation0]]
  $region38: #{tpu_custom_call.1} parent=0
    _
  %s6 = ssub.s32 1, %s4
  %s7 = scalar_select 0, %s6, %s4
  $region1: #{tpu_custom_call.1} parent=0
    #allocation3 [shape = 'u8[8192]{0}', space=vmem, size = 0x2000, scoped, tag = 'input window, operand 0, single buffered']
    #allocation4 [shape = 's32[1]{0}', space=sflag, size = 0x4, scoped, tag = 'scoped memory for tpu_custom_call.1']
    #allocation5 [shape = 's32[1]{0}', space=sflag, size = 0x4, scoped, tag = 'scoped memory for tpu_custom_call.1']
    #allocation6 [shape = 'u8[4096]{0}', space=vmem, size = 0x1000, scoped, tag = 'input window, operand 1, single buffered']
    #allocation7 [shape = 's32[1]{0}', space=sflag, size = 0x4, scoped, tag = 'scoped memory for tpu_custom_call.1']
    #allocation8 [shape = 'u8[1024]{0}', space=vmem, size = 0x400, scoped, tag = 'output window, operand 0, single buffered']
    %8 = vsyncpa [#allocation4], 0
    %9 = vsyncpa [#allocation7], 0
    %10 = vsyncpa [#allocation5], 0
    // Predicated region
    $region2: #{tpu_custom_call.1} parent=1 // pred_check
      _
    $region3: #{tpu_custom_call.1} parent=1 // pred_check_branch
      %12 = sbr.rel (0) target = $region5
    $region4: #{tpu_custom_call.1} parent=1 // pred_region
      %s14 = ssub.s32 256, 256
      %15 = vsyncadd [#allocation4], %s14
      %s16 = sshll.u32 [#allocation3], 4
      %s17 = int_to_ptr.vmem [resolvable:$true] %s16
      %22 = dma.hbm_to_vmem [thread:$0]  %s0, 256, %s17, [#allocation4], 128, 128, 8
    $region5: #{tpu_custom_call.1} parent=1 // pred_fallthru
      _
    // Predicated region
    $region6: #{tpu_custom_call.1} parent=1 // pred_check
      _
    $region7: #{tpu_custom_call.1} parent=1 // pred_check_branch
      %24 = sbr.rel (0) target = $region9
    $region8: #{tpu_custom_call.1} parent=1 // pred_region
      %s26 = ssub.s32 128, 128
      %27 = vsyncadd [#allocation7], %s26
      %s29 = sshll.u32 [#allocation6], 4
      %s30 = int_to_ptr.vmem [resolvable:$true] %s29
      %32 = dma.hbm_to_vmem [thread:$0]  %s1, 128, %s30, [#allocation7]
    $region9: #{tpu_custom_call.1} parent=1 // pred_fallthru
      _
    // Predicated region
    $region10: #{tpu_custom_call.1} parent=1 // pred_check
      _
    $region11: #{tpu_custom_call.1} parent=1 // pred_check_branch
      %34 = sbr.rel (0) target = $region13
    $region12: #{tpu_custom_call.1} parent=1 // pred_region
      _
    $region13: #{tpu_custom_call.1} parent=1 // pred_fallthru
      _
    // Predicated region
    $region14: #{tpu_custom_call.1} parent=1 // pred_check
      _
    $region15: #{tpu_custom_call.1} parent=1 // pred_check_branch
      %36 = sbr.rel (0) target = $region17
    $region16: #{tpu_custom_call.1} parent=1 // pred_region
      %37 = dma.done [#allocation4], 256
    $region17: #{tpu_custom_call.1} parent=1 // pred_fallthru
      _
    // Predicated region
    $region18: #{tpu_custom_call.1} parent=1 // pred_check
      _
    $region19: #{tpu_custom_call.1} parent=1 // pred_check_branch
      %39 = sbr.rel (0) target = $region21
    $region20: #{tpu_custom_call.1} parent=1 // pred_region
      %40 = dma.done [#allocation7], 128
    $region21: #{tpu_custom_call.1} parent=1 // pred_fallthru
      _
    %p41 = scmp.eq.s32.totalorder 0, 0
    // Predicated region
    $region22: #{tpu_custom_call.1} parent=1 // pred_check
      %p42 = pneg %p41
    $region23: #{tpu_custom_call.1} parent=1 // pred_check_branch
      %44 = sbr.rel (%p42) target = $region25
    $region24: #{tpu_custom_call.1} parent=1 // pred_region
      %vm45 = vcmask 58368
      %46 = vst.msk [vmem:[#allocation2] sm:$0x3] %vm45, 0.0
    $region25: #{tpu_custom_call.1} parent=1 // pred_fallthru
      _
    %v47 = vld [vmem:[#allocation2] sm:$0x3]
    %v48 = vld [vmem:[#allocation3] sm:$0xff]
    %v49 = vld [vmem:[#allocation3 + $0x8] sm:$0xff]
    %vm50 = vcmask 523264
    %v51 = vsel %vm50, %v48, 0.0
    %52 = vadd.xlane.f32.xlu0 %v51
    %v53 = vpop.xlane.xlu0 %52
    %v54 = vsel %vm50, %v49, 0.0
    %55 = vadd.xlane.f32.xlu0 %v54
    %v56 = vpop.xlane.xlu0 %55
    %v59 = vlaneseq
    %v60 = vand.u32 %v59, 127
    %v61 = vlaneseq
    %v62 = vshrl.u32 %v61, 7
    %v63 = vsub.s32 %v60, %v62
    %v64 = vrot.slane %v53, %v63
    %v65 = vlaneseq
    %v66 = vshrl.u32 %v65, 7
    %v67 = vsub.s32 %v60, %v66
    %v68 = vrot.slane %v56, %v67
    %vm69 = vcmask 1041409
    %v70 = vsel %vm69, %v68, %v64
    %v72 = vadd.f32 %v47, %v70
    %vm73 = vcmask 58368
    %74 = vst.msk [vmem:[#allocation2] sm:$0x3] %vm73, %v72
    // Predicated region
    $region26: #{tpu_custom_call.1} parent=1 // pred_check
      %p75 = pneg %p41
    $region27: #{tpu_custom_call.1} parent=1 // pred_check_branch
      %77 = sbr.rel (%p75) target = $region29
    $region28: #{tpu_custom_call.1} parent=1 // pred_region
      %v78 = vld [vmem:[#allocation2] sm:$0x3]
      %v79 = vmul.f32 %v78, 0.015625
      %v80 = vld [vmem:[#allocation6] sm:$0xff]
      %v81 = vld [vmem:[%s2] sm:$0x1]
      %v83 = vlaneseq
      %v84 = vshrl.u32 %v83, 7
      %v85 = vsub.s32 0, %v84
      %v86 = vrot.slane %v81, %v85
      %vm88 = vcmask 64512
      %v90 = vsel %vm88, %v79, 0
      %92 = vmatprep.subr.mxu0 0.0
      %93 = vmatpush1.msra.mxu0 %v80
      %94 = vmatprep.subr.mxu0 0.0
      %95 = vmatpush1.msra.mxu0 0.0
      %96 = vmatprep.subr.mxu0 0.0
      %97 = vmatpush1.msra.mxu0 0.0
      %98 = vmatprep.subr.mxu0 0.0
      %99 = vmatpush1.msra.mxu0 0.0
      %100 = vmatprep.subr.mxu0 0.0
      %101 = vmatpush1.msra.mxu0 0.0
      %102 = vmatprep.subr.mxu0 0.0
      %103 = vmatpush1.msra.mxu0 0.0
      %104 = vmatprep.subr.mxu0 0.0
      %105 = vmatpush1.msra.mxu0 0.0
      %106 = vmatprep.subr.mxu0 0.0
      %107 = vmatpush1.msra.mxu0 0.0
      %108 = vmatprep.subr.mxu0 0.0
      %109 = vmatpush1.msra.mxu0 0.0
      %110 = vmatprep.subr.mxu0 0.0
      %111 = vmatpush1.msra.mxu0 0.0
      %112 = vmatprep.subr.mxu0 0.0
      %113 = vmatpush1.msra.mxu0 0.0
      %114 = vmatprep.subr.mxu0 0.0
      %115 = vmatpush1.msra.mxu0 0.0
      %116 = vmatprep.subr.mxu0 0.0
      %117 = vmatpush1.msra.mxu0 0.0
      %118 = vmatprep.subr.mxu0 0.0
      %119 = vmatpush1.msra.mxu0 0.0
      %120 = vmatprep.subr.mxu0 0.0
      %121 = vmatpush1.msra.mxu0 0.0
      %122 = vmatprep.subr.mxu0 0.0
      %123 = vmatpush1.msra.mxu0 0.0
      %124 = vmatprep.subr.mxu0 0.0
      %125 = vmatpush1.msra.mxu0 0.0
      %126 = vmatprep.subr.mxu0 0.0
      %127 = vmatpush1.msra.mxu0 0.0
      %128 = vmatprep.subr.mxu0 0.0
      %129 = vmatpush1.msra.mxu0 0.0
      %130 = vmatprep.subr.mxu0 0.0
      %131 = vmatpush1.msra.mxu0 0.0
      %132 = vmatprep.subr.mxu0 0.0
      %133 = vmatpush1.msra.mxu0 0.0
      %134 = vmatprep.subr.mxu0 0.0
      %135 = vmatpush1.msra.mxu0 0.0
      %136 = vmatprep.subr.mxu0 0.0
      %137 = vmatpush1.msra.mxu0 0.0
      %138 = vmatprep.subr.mxu0 0.0
      %139 = vmatpush1.msra.mxu0 0.0
      %140 = vmatprep.subr.mxu0 0.0
      %141 = vmatpush1.msra.mxu0 0.0
      %142 = vmatprep.subr.mxu0 0.0
      %143 = vmatpush1.msra.mxu0 0.0
      %144 = vmatprep.subr.mxu0 0.0
      %145 = vmatpush1.msra.mxu0 0.0
      %146 = vmatprep.subr.mxu0 0.0
      %147 = vmatpush1.msra.mxu0 0.0
      %148 = vmatprep.subr.mxu0 0.0
      %149 = vmatpush1.msra.mxu0 0.0
      %150 = vmatprep.subr.mxu0 0.0
      %151 = vmatpush1.msra.mxu0 0.0
      %152 = vmatprep.subr.mxu0 0.0
      %153 = vmatpush1.msra.mxu0 0.0
      %154 = vmatprep.subr.mxu0 0.0
      %155 = vmatpush1.msra.mxu0 0.0
      %156 = vmatprep.mubr.f32.mxu0 0.0
      %157 = vmatmul.mubr.f32.gmra.mrb[0].mxu0 %v90
      %v158 = vpop.f32.mrb[0].mxu0
      %v159 = vadd.f32 %v86, %v158
      %v160 = vpop.f32.mrb[0].mxu0
      %161 = vdwg.mxu0
      %vm162 = vcmask 74752
      %163 = vst.msk [vmem:[#allocation8] sm:$0x3] %vm162, %v159
    $region29: #{tpu_custom_call.1} parent=1 // pred_fallthru
      _
    // Predicated region
    $region30: #{tpu_custom_call.1} parent=1 // pred_check
      _
    $region31: #{tpu_custom_call.1} parent=1 // pred_check_branch
      %165 = sbr.rel (0) target = $region33
    $region32: #{tpu_custom_call.1} parent=1 // pred_region
      %s167 = ssub.s32 32, 32
      %168 = vsyncadd [#allocation5], %s167
      %s170 = sshll.u32 [#allocation8], 4
      %s171 = int_to_ptr.vmem [resolvable:$true] %s170
      %173 = dma.vmem_to_hbm [thread:$0]  %s171, 32, %s3, [#allocation5]
    $region33: #{tpu_custom_call.1} parent=1 // pred_fallthru
      _
    // Predicated region
    $region34: #{tpu_custom_call.1} parent=1 // pred_check
      _
    $region35: #{tpu_custom_call.1} parent=1 // pred_check_branch
      %175 = sbr.rel (0) target = $region37
    $region36: #{tpu_custom_call.1} parent=1 // pred_region
      %176 = dma.done [#allocation5], 32
    $region37: #{tpu_custom_call.1} parent=1 // pred_fallthru
      _
    %177 = vsyncpa [#allocation4], 1
    %178 = vsyncpa [#allocation7], 1
    %179 = vsyncpa [#allocation5], 1

</llo_original>
